<compile_context>
chip_gen: v7x
topology: tpu7x:2x2x1
jax: 0.10.0
libtpu: 0.0.40
codegen_flags: <defaults>
</compile_context>

<pallas_src>
import functools

import jax
import jax.numpy as jnp
import numpy as np
from jax.experimental import pallas as pl
from jax.experimental.pallas import tpu as pltpu


# ----------------------------- Pallas kernel -----------------------------

def _proj_layer_kernel(x_ref, rw_ref, wt_ref, b_ref, g_ref, beta_ref, o_ref,
                       *, act, rel_num_base, emb_dim, compute_dtype):
    E, R = emb_dim, rel_num_base
    xc = x_ref[...].astype(compute_dtype)          # (tm, E) bf16 MXU operand
    rw = rw_ref[...].astype(jnp.float32)           # (tm, R)

    # Bias term on the MXU (tiny K=R matmul) doubles as the z initializer:
    #   z = rw @ bias == sum_w rw[:, w] * bias[w, :]
    z = jnp.dot(rw, b_ref[...], preferred_element_type=jnp.float32)   # (tm, E)

    if E >= 256:
        # Per-base matmuls: only one E-wide f32 slice live at a time.
        for w in range(R):
            y_w = jnp.dot(xc, wt_ref[:, w * E:(w + 1) * E],
                          preferred_element_type=jnp.float32)
            z = z + rw[:, w:w + 1] * y_w
    else:
        # Small E: one wide matmul fills the MXU lanes; y stays small.
        y = jnp.dot(xc, wt_ref[...], preferred_element_type=jnp.float32)
        for w in range(R):
            z = z + rw[:, w:w + 1] * y[:, w * E:(w + 1) * E]

    # LayerNorm over last dim (eps=1e-5, biased variance, affine), in f32.
    mean = jnp.mean(z, axis=-1, keepdims=True)
    var = jnp.mean((z - mean) ** 2, axis=-1, keepdims=True)
    zn = (z - mean) * jax.lax.rsqrt(var + 1e-5)
    zn = zn * g_ref[...] + beta_ref[...]

    out = jnp.maximum(zn, 0.0) if act == "relu" else jax.nn.sigmoid(zn)
    o_ref[...] = out.astype(o_ref.dtype)


def _physical_vmem_bytes():
    try:
        info = pltpu.get_tpu_info()
        return int(getattr(info, "vmem_capacity_bytes", 0)) or (64 << 20)
    except Exception:
        return 64 << 20     # conservative fallback (v7x per-TensorCore size)


def proj_layer(x, rel_w, layer_params, *, act, tm=None,
               compute_dtype=jnp.bfloat16):
    """One fused layer: act(LN(einsum('bw,bwj->bj', rel_w, Linear(x))))."""
    B, E = x.shape
    R = rel_w.shape[1]
    out_dtype = x.dtype
    x_bytes = np.dtype(x.dtype).itemsize
    o_bytes = np.dtype(out_dtype).itemsize
    w_bytes = np.dtype(compute_dtype).itemsize
    # Note: E that is not a multiple of 128 is correct but slow (masked lanes).

    # ---- batch-tile selection --------------------------------------------
    if tm is None:
        tm = 1024 if E <= 512 else 256       # small-E regime is overhead-bound
    tm_eff = max(8, min((tm // 8) * 8, ((B + 7) // 8) * 8))
    if B >= 16:                              # keep >= 2 grid steps (v7x megacore)
        tm_eff = min(tm_eff, (((B + 1) // 2 + 7) // 8) * 8)

    # ---- VMEM budget (weights single-buffered, x/out double-buffered) -----
    wt_resident = E * R * E * w_bytes
    const_bytes = (R * E + 2 * E) * 4

    def vmem_need(t):
        tiles = 2 * t * E * x_bytes + 2 * t * R * 4 + 2 * t * E * o_bytes
        scratch = t * E * 4 * (3 if E >= 256 else (R + 2))
        return wt_resident + const_bytes + tiles + scratch

    cap = int(_physical_vmem_bytes() * 0.75)
    while tm_eff > 64 and vmem_need(tm_eff) > cap:
        tm_eff = max(64, ((tm_eff // 2) // 8) * 8)
    # TODO(synk): if wt_resident alone exceeds the cap (huge E), tile the
    # weight columns over a second grid axis instead of keeping W.T resident.
    vmem_limit = min(cap, max(16 << 20, int(vmem_need(tm_eff) * 1.25) + (4 << 20)))

    grid = pl.cdiv(B, tm_eff)   # partial last block: reads are garbage rows,
                                # writes are masked; rows are independent.

    kernel = functools.partial(_proj_layer_kernel, act=act, rel_num_base=R,
                               emb_dim=E, compute_dtype=compute_dtype)
    resident = dict(pipeline_mode=pl.Buffered(1))     # constant-index blocks

    return pl.pallas_call(
        kernel,
        out_shape=jax.ShapeDtypeStruct((B, E), out_dtype),
        grid_spec=pltpu.PrefetchScalarGridSpec(
            num_scalar_prefetch=0,
            grid=(grid,),
            in_specs=[
                pl.BlockSpec((tm_eff, E), lambda i: (i, 0)),             # x tile
                pl.BlockSpec((tm_eff, R), lambda i: (i, 0)),             # rel_w tile
                pl.BlockSpec((E, R * E), lambda i: (0, 0), **resident),  # W.T (bf16)
                pl.BlockSpec((R, E), lambda i: (0, 0), **resident),      # bias
                pl.BlockSpec((1, E), lambda i: (0, 0), **resident),      # LN gamma
                pl.BlockSpec((1, E), lambda i: (0, 0), **resident),      # LN beta
            ],
            out_specs=pl.BlockSpec((tm_eff, E), lambda i: (i, 0)),
        ),
        compiler_params=pltpu.CompilerParams(
            dimension_semantics=("parallel",),
            vmem_limit_bytes=vmem_limit),
    )(x, rel_w.astype(jnp.float32), layer_params["Wt"], layer_params["bias"],
      layer_params["gamma"], layer_params["beta"])


# ----------------------------- module glue -----------------------------

def xavier_uniform(key, shape, gain=1.0):
    rf = int(np.prod(shape[2:])) if len(shape) > 2 else 1
    fan_in, fan_out = shape[1] * rf, shape[0] * rf
    bound = gain * float(np.sqrt(6.0 / (fan_in + fan_out)))
    return jax.random.uniform(key, shape, jnp.float32, -bound, bound)


def init_params(key, *, ent_grid, ent_dim, n_relation, rel_num_base, num_lay):
    emb_dim = ent_grid * ent_dim
    params = {}
    keys = jax.random.split(key, 1 + 2 * num_lay)
    params["weights"] = xavier_uniform(
        keys[0], (n_relation, rel_num_base, num_lay), gain=float(np.sqrt(2.0)))
    for n1 in range(1, num_lay + 1):
        wkey, bkey = keys[2 * n1 - 1], keys[2 * n1]
        out_f, in_f = rel_num_base * emb_dim, emb_dim
        params[f"W{n1}"] = xavier_uniform(wkey, (out_f, in_f))            # (out, in)
        bb = 1.0 / float(np.sqrt(in_f))
        params[f"b{n1}"] = jax.random.uniform(bkey, (out_f,), jnp.float32, -bb, bb)
        params[f"g{n1}"] = jnp.ones((emb_dim,), jnp.float32)
        params[f"be{n1}"] = jnp.zeros((emb_dim,), jnp.float32)
    return params


def prepare_params(params, *, num_lay, emb_dim, rel_num_base,
                   compute_dtype=jnp.bfloat16):
    """Hoist per-layer transpose/cast/reshape out of the per-call path."""
    layers = []
    for n1 in range(1, num_lay + 1):
        layers.append(dict(
            Wt=params[f"W{n1}"].T.astype(compute_dtype),                    # (E, R*E)
            bias=params[f"b{n1}"].reshape(rel_num_base, emb_dim).astype(jnp.float32),
            gamma=params[f"g{n1}"].reshape(1, emb_dim).astype(jnp.float32),
            beta=params[f"be{n1}"].reshape(1, emb_dim).astype(jnp.float32),
        ))
    return {"weights": params["weights"], "layers": tuple(layers)}


def wasserstein_projection_forward(ent_emb, proj_ids, prepared, *, num_lay,
                                   tm=None, compute_dtype=jnp.bfloat16,
                                   compute_hidden_layers=False):
    # gather per-example relation coefficients (index_select)
    rel_weights = jnp.take(prepared["weights"], proj_ids.reshape(-1), axis=0)  # (B,R,L)
    if compute_hidden_layers:
        # Mirrors the PyTorch control flow; the result never reaches the output
        # (dead compute in the original module as well).
        x = ent_emb
        for n1 in range(2, num_lay + 1):
            x = proj_layer(x, rel_weights[:, :, n1 - 1], prepared["layers"][n1 - 1],
                           act="relu", tm=tm, compute_dtype=compute_dtype)
    return proj_layer(ent_emb, rel_weights[:, :, 0], prepared["layers"][0],
                      act="sigmoid", tm=tm, compute_dtype=compute_dtype)


# --------------------- pure-JAX reference for checking ---------------------

def _reference_forward(ent_emb, proj_ids, params, *, num_lay, bf16_matmul=False):
    hp = jax.lax.Precision.HIGHEST

    def cast(a):
        return a.astype(jnp.bfloat16).astype(jnp.float32) if bf16_matmul else a

    def ln(z, g, b):
        m = jnp.mean(z, -1, keepdims=True)
        v = jnp.mean((z - m) ** 2, -1, keepdims=True)
        return (z - m) / jnp.sqrt(v + 1e-5) * g + b

    rel_w = params["weights"][proj_ids.reshape(-1)]          # (B, R, L)
    B, E = ent_emb.shape

    def layer(x, n1, act):
        W, b = params[f"W{n1}"], params[f"b{n1}"]
        y = jnp.dot(cast(x), cast(W).T, precision=hp) + b    # (B, R*E)
        y3 = y.reshape(B, -1, E)
        z = jnp.sum(rel_w[:, :, n1 - 1][:, :, None] * y3, axis=1)
        z = ln(z, params[f"g{n1}"], params[f"be{n1}"])
        return jnp.maximum(z, 0.0) if act == "relu" else jax.nn.sigmoid(z)

    return layer(ent_emb, 1, "sigmoid")


def _run_config(name, *, ent_grid, ent_dim, n_relation, rel_num_base, num_lay,
                batch):
    emb_dim = ent_grid * ent_dim
    key = jax.random.PRNGKey(0)
    kp, ke, ki = jax.random.split(key, 3)

    params = init_params(kp, ent_grid=ent_grid, ent_dim=ent_dim,
                         n_relation=n_relation, rel_num_base=rel_num_base,
                         num_lay=num_lay)
    prepared = prepare_params(params, num_lay=num_lay, emb_dim=emb_dim,
                              rel_num_base=rel_num_base)
    ent_emb = jax.random.normal(ke, (batch, emb_dim), jnp.float32)
    proj_ids = jax.random.randint(ki, (batch,), 0, n_relation, jnp.int32)

    fwd = jax.jit(functools.partial(wasserstein_projection_forward,
                                    num_lay=num_lay))
    out = jax.block_until_ready(fwd(ent_emb, proj_ids, prepared))
    assert out.shape == (batch, emb_dim)

    # bf16-matched reference (same operand rounding) -> tight logic check
    ref_bf16 = _reference_forward(ent_emb, proj_ids, params, num_lay=num_lay,
                                  bf16_matmul=True)
    np.testing.assert_allclose(np.asarray(out), np.asarray(ref_bf16),
                               rtol=5e-3, atol=5e-3, err_msg=name)
    # full-f32 reference -> loose check bounding the bf16 operand error
    ref_f32 = _reference_forward(ent_emb, proj_ids, params, num_lay=num_lay,
                                 bf16_matmul=False)
    np.testing.assert_allclose(np.asarray(out), np.asarray(ref_f32),
                               rtol=6e-2, atol=6e-2, err_msg=name)


if __name__ == "__main__":
    # Config A: E=128 -> wide-matmul path; batch not a tile multiple, so it
    # exercises the masked partial last block and the >=2-grid-step cap.
    _run_config("E=128", ent_grid=8, ent_dim=16, n_relation=5,
                rel_num_base=4, num_lay=2, batch=24)
    # Config B: E=256 -> per-base matmul path (z accumulated slice by slice).
    _run_config("E=256", ent_grid=8, ent_dim=32, n_relation=5,
                rel_num_base=4, num_lay=2, batch=40)
    print("KERNEL_OK")
</pallas_src>

<mosaic_0001>
module attributes {stable_mosaic.version = 11 : i64} {
  func.func @_proj_layer_kernel(%arg0: i32, %arg1: memref<16x128xf32, #tpu.memory_space<vmem>>, %arg2: memref<16x4xf32, #tpu.memory_space<vmem>>, %arg3: memref<128x512xbf16, #tpu.memory_space<vmem>>, %arg4: memref<4x128xf32, #tpu.memory_space<vmem>>, %arg5: memref<1x128xf32, #tpu.memory_space<vmem>>, %arg6: memref<1x128xf32, #tpu.memory_space<vmem>>, %arg7: memref<16x128xf32, #tpu.memory_space<vmem>>) attributes {dimension_semantics = [#tpu.dimension_semantics<parallel>], iteration_bounds = array<i64: 2>, scalar_prefetch = 0 : i64, scratch_operands = 0 : i64, tpu.core_type = #tpu.core_type<tc>, window_params = [{transform_indices = @transform_0, window_bounds = array<i64: 16, 128>}, {transform_indices = @transform_1, window_bounds = array<i64: 16, 4>}, {pipeline_mode = #tpu.pipeline_mode<synchronous>, transform_indices = @transform_2, window_bounds = array<i64: 128, 512>}, {pipeline_mode = #tpu.pipeline_mode<synchronous>, transform_indices = @transform_3, window_bounds = array<i64: 4, 128>}, {pipeline_mode = #tpu.pipeline_mode<synchronous>, transform_indices = @transform_4, window_bounds = array<i64: 1, 128>}, {pipeline_mode = #tpu.pipeline_mode<synchronous>, transform_indices = @transform_5, window_bounds = array<i64: 1, 128>}, {transform_indices = @transform_6, window_bounds = array<i64: 16, 128>}]} {
    %c0 = arith.constant 0 : index
    %c0_0 = arith.constant 0 : index
    %0 = vector.load %arg1[%c0, %c0_0] : memref<16x128xf32, #tpu.memory_space<vmem>>, vector<16x128xf32>
    %1 = arith.truncf %0 : vector<16x128xf32> to vector<16x128xbf16>
    %c0_1 = arith.constant 0 : index
    %c0_2 = arith.constant 0 : index
    %2 = vector.load %arg2[%c0_1, %c0_2] : memref<16x4xf32, #tpu.memory_space<vmem>>, vector<16x4xf32>
    %c0_3 = arith.constant 0 : index
    %c0_4 = arith.constant 0 : index
    %3 = vector.load %arg4[%c0_3, %c0_4] : memref<4x128xf32, #tpu.memory_space<vmem>>, vector<4x128xf32>
    %cst = arith.constant dense<0.000000e+00> : vector<16x128xf32>
    %4 = tpu.matmul %2, %3, %cst {dimension_numbers = #tpu.dot_dimension_numbers<[1], [0], [0], [1], [0, 0, 1, 1], [], []>} : vector<16x4xf32>, vector<4x128xf32>, vector<16x128xf32> -> vector<16x128xf32>
    %c0_5 = arith.constant 0 : index
    %c0_6 = arith.constant 0 : index
    %5 = vector.load %arg3[%c0_5, %c0_6] : memref<128x512xbf16, #tpu.memory_space<vmem>>, vector<128x512xbf16>
    %cst_7 = arith.constant dense<0.000000e+00> : vector<16x512xf32>
    %6 = tpu.matmul %1, %5, %cst_7 {dimension_numbers = #tpu.dot_dimension_numbers<[1], [0], [0], [1], [0, 0, 1, 1], [], []>} : vector<16x128xbf16>, vector<128x512xbf16>, vector<16x512xf32> -> vector<16x512xf32>
    %7 = vector.extract_strided_slice %2 {offsets = [0, 0], sizes = [16, 1], strides = [1, 1]} : vector<16x4xf32> to vector<16x1xf32>
    %8 = vector.extract_strided_slice %6 {offsets = [0, 0], sizes = [16, 128], strides = [1, 1]} : vector<16x512xf32> to vector<16x128xf32>
    %9 = vector.broadcast %7 : vector<16x1xf32> to vector<16x128xf32>
    %10 = arith.mulf %9, %8 : vector<16x128xf32>
    %11 = arith.addf %4, %10 : vector<16x128xf32>
    %12 = vector.extract_strided_slice %2 {offsets = [0, 1], sizes = [16, 1], strides = [1, 1]} : vector<16x4xf32> to vector<16x1xf32>
    %13 = vector.extract_strided_slice %6 {offsets = [0, 128], sizes = [16, 128], strides = [1, 1]} : vector<16x512xf32> to vector<16x128xf32>
    %14 = vector.broadcast %12 : vector<16x1xf32> to vector<16x128xf32>
    %15 = arith.mulf %14, %13 : vector<16x128xf32>
    %16 = arith.addf %11, %15 : vector<16x128xf32>
    %17 = vector.extract_strided_slice %2 {offsets = [0, 2], sizes = [16, 1], strides = [1, 1]} : vector<16x4xf32> to vector<16x1xf32>
    %18 = vector.extract_strided_slice %6 {offsets = [0, 256], sizes = [16, 128], strides = [1, 1]} : vector<16x512xf32> to vector<16x128xf32>
    %19 = vector.broadcast %17 : vector<16x1xf32> to vector<16x128xf32>
    %20 = arith.mulf %19, %18 : vector<16x128xf32>
    %21 = arith.addf %16, %20 : vector<16x128xf32>
    %22 = vector.extract_strided_slice %2 {offsets = [0, 3], sizes = [16, 1], strides = [1, 1]} : vector<16x4xf32> to vector<16x1xf32>
    %23 = vector.extract_strided_slice %6 {offsets = [0, 384], sizes = [16, 128], strides = [1, 1]} : vector<16x512xf32> to vector<16x128xf32>
    %24 = vector.broadcast %22 : vector<16x1xf32> to vector<16x128xf32>
    %25 = arith.mulf %24, %23 : vector<16x128xf32>
    %26 = arith.addf %21, %25 : vector<16x128xf32>
    %cst_8 = arith.constant dense<0.000000e+00> : vector<16xf32>
    %27 = vector.multi_reduction <add>, %26, %cst_8 [1] : vector<16x128xf32> to vector<16xf32>
    %28 = vector.shape_cast %27 : vector<16xf32> to vector<16x1xf32>
    %cst_9 = arith.constant 1.280000e+02 : f32
    %29 = vector.broadcast %cst_9 : f32 to vector<16x1xf32>
    %30 = arith.divf %28, %29 : vector<16x1xf32>
    %31 = vector.broadcast %30 : vector<16x1xf32> to vector<16x128xf32>
    %32 = arith.subf %26, %31 : vector<16x128xf32>
    %33 = arith.mulf %32, %32 : vector<16x128xf32>
    %cst_10 = arith.constant dense<0.000000e+00> : vector<16xf32>
    %34 = vector.multi_reduction <add>, %33, %cst_10 [1] : vector<16x128xf32> to vector<16xf32>
    %35 = vector.shape_cast %34 : vector<16xf32> to vector<16x1xf32>
    %cst_11 = arith.constant 1.280000e+02 : f32
    %36 = vector.broadcast %cst_11 : f32 to vector<16x1xf32>
    %37 = arith.divf %35, %36 : vector<16x1xf32>
    %38 = vector.broadcast %30 : vector<16x1xf32> to vector<16x128xf32>
    %39 = arith.subf %26, %38 : vector<16x128xf32>
    %cst_12 = arith.constant 9.99999974E-6 : f32
    %40 = vector.broadcast %cst_12 : f32 to vector<16x1xf32>
    %41 = arith.addf %37, %40 : vector<16x1xf32>
    %42 = math.rsqrt %41 : vector<16x1xf32>
    %43 = vector.broadcast %42 : vector<16x1xf32> to vector<16x128xf32>
    %44 = arith.mulf %39, %43 : vector<16x128xf32>
    %c0_13 = arith.constant 0 : index
    %c0_14 = arith.constant 0 : index
    %45 = vector.load %arg5[%c0_13, %c0_14] : memref<1x128xf32, #tpu.memory_space<vmem>>, vector<1x128xf32>
    %46 = vector.broadcast %45 : vector<1x128xf32> to vector<16x128xf32>
    %47 = arith.mulf %44, %46 : vector<16x128xf32>
    %c0_15 = arith.constant 0 : index
    %c0_16 = arith.constant 0 : index
    %48 = vector.load %arg6[%c0_15, %c0_16] : memref<1x128xf32, #tpu.memory_space<vmem>>, vector<1x128xf32>
    %49 = vector.broadcast %48 : vector<1x128xf32> to vector<16x128xf32>
    %50 = arith.addf %47, %49 : vector<16x128xf32>
    %51 = arith.negf %50 : vector<16x128xf32>
    %52 = math.exp %51 : vector<16x128xf32>
    %cst_17 = arith.constant 1.000000e+00 : f32
    %53 = vector.broadcast %cst_17 : f32 to vector<16x128xf32>
    %54 = arith.addf %53, %52 : vector<16x128xf32>
    %55 = arith.divf %53, %54 : vector<16x128xf32>
    %c0_18 = arith.constant 0 : index
    %c0_19 = arith.constant 0 : index
    %56 = vector.load %arg7[%c0_18, %c0_19] : memref<16x128xf32, #tpu.memory_space<vmem>>, vector<16x128xf32>
    tpu.vector_store %arg7[%c0_18, %c0_19], %55 {strides = array<i32>} : memref<16x128xf32, #tpu.memory_space<vmem>>, vector<16x128xf32>,
    return
  }
  func.func @transform_0(%arg0: i32) -> (i32, i32) {
    %c0_i32 = arith.constant 0 : i32
    %c0_i32_0 = arith.constant 0 : i32
    return %arg0, %c0_i32 : i32, i32
  }
  func.func @transform_1(%arg0: i32) -> (i32, i32) {
    %c0_i32 = arith.constant 0 : i32
    %c0_i32_0 = arith.constant 0 : i32
    return %arg0, %c0_i32 : i32, i32
  }
  func.func @transform_2(%arg0: i32) -> (i32, i32) {
    %c0_i32 = arith.constant 0 : i32
    %c0_i32_0 = arith.constant 0 : i32
    %c0_i32_1 = arith.constant 0 : i32
    return %c0_i32, %c0_i32_0 : i32, i32
  }
  func.func @transform_3(%arg0: i32) -> (i32, i32) {
    %c0_i32 = arith.constant 0 : i32
    %c0_i32_0 = arith.constant 0 : i32
    %c0_i32_1 = arith.constant 0 : i32
    return %c0_i32, %c0_i32_0 : i32, i32
  }
  func.func @transform_4(%arg0: i32) -> (i32, i32) {
    %c0_i32 = arith.constant 0 : i32
    %c0_i32_0 = arith.constant 0 : i32
    %c0_i32_1 = arith.constant 0 : i32
    return %c0_i32, %c0_i32_0 : i32, i32
  }
  func.func @transform_5(%arg0: i32) -> (i32, i32) {
    %c0_i32 = arith.constant 0 : i32
    %c0_i32_0 = arith.constant 0 : i32
    %c0_i32_1 = arith.constant 0 : i32
    return %c0_i32, %c0_i32_0 : i32, i32
  }
  func.func @transform_6(%arg0: i32) -> (i32, i32) {
    %c0_i32 = arith.constant 0 : i32
    %c0_i32_0 = arith.constant 0 : i32
    return %arg0, %c0_i32 : i32, i32
  }
}

</mosaic_0001>

<llo_original>
// kernel: wasserstein_projection_forward.1
$region0: #{wasserstein_projection_forward.1}
  #allocation0 [shape = 'u32[]', space=smem, size = 0x4, offset = 0x4, fixed_abs, tag = 'smem constant byte address 0x4 - core index']
  #allocation1 [shape = 'u32[144,128]{1,0:T(1,128)}', space=vmem, size = 0x12000, scoped, tag = 'internal scratch']
  %s0 = inlined_call_operand.vmem [shape: f32[24,128], index: 0, kind: input, shape index: {}]
  %s1 = inlined_call_operand.vmem [shape: f32[24,4], index: 1, kind: input, shape index: {}]
  %s2 = inlined_call_operand.vmem [shape: bf16[128,512], index: 2, kind: input, shape index: {}]
  %s3 = inlined_call_operand.hbm [shape: f32[4,128], index: 3, kind: input, shape index: {}]
  %s4 = inlined_call_operand.vmem [shape: f32[1,128], index: 4, kind: input, shape index: {}]
  %s5 = inlined_call_operand.vmem [shape: f32[1,128], index: 5, kind: input, shape index: {}]
  %s6 = inlined_call_operand.hbm [shape: f32[24,128], index: 6, kind: output, shape index: {}]
  %s7 = sld [smem:[#allocation0]]
  $region61: #{wasserstein_projection_forward.1} parent=0
    _
  %s9 = ssub.s32 1, %s7
  %s10 = scalar_select 0, %s9, %s7
  $region1: #{wasserstein_projection_forward.1} parent=0
    #allocation2 [shape = 'u8[2048]{0}', space=vmem, size = 0x800, scoped, tag = 'input window, operand 3, single buffered']
    #allocation3 [shape = 's32[2]{0}', space=sflag, size = 0x8, scoped, tag = 'scoped memory for wasserstein_projection_forward.1']
    #allocation4 [shape = 's32[2]{0}', space=sflag, size = 0x8, scoped, tag = 'scoped memory for wasserstein_projection_forward.1']
    #allocation5 [shape = 'u8[16384]{0}', space=vmem, size = 0x4000, scoped, tag = 'output window, operand 0']
    %11 = vsyncpa [#allocation3], 0
    %12 = vsyncpa [#allocation4], 0
    %s13 = scalar_lea.sflag [#allocation4], 1
    %14 = vsyncpa %s13, 0
    loop: start=0, step=1, limit=4
    $region2: #{wasserstein_projection_forward.1} parent=1 // loop_pre_header
      _
    $region3: #{wasserstein_projection_forward.1} parent=1 // loop_header
      %s16 = sphi 0, %s20
      %p17 = scmp.ge.s32.totalorder %s16, 4
      %s26 = sphi 0, %s28
      %s29 = sphi 0, %s26
      %s30 = sphi 0, %s29
      %s46 = sphi 0, %s30
      %s52 = sphi 0, %s54
      %s55 = sphi 0, %s52
      %s56 = sphi 0, %s55
      %s72 = sphi 0, %s56
      %s76 = sphi 0, %s76
      %s78 = sphi 0, %s76
      %s79 = sphi 0, %s78
      %s93 = sphi 0, %s79
      %s97 = sphi 0, %s97
      %s99 = sphi 0, %s97
      %s100 = sphi 0, %s99
      %s114 = sphi 0, %s100
      %s118 = sphi 0, %s118
      %s120 = sphi 0, %s118
      %s121 = sphi 0, %s120
      %s135 = sphi 0, %s121
      %s139 = sphi 0, %s139
      %s141 = sphi 0, %s139
      %s142 = sphi 0, %s141
      %s156 = sphi 0, %s142
      %s162 = sphi 0, %s164
      %s165 = sphi 0, %s162
      %s166 = sphi 0, %s165
      %s182 = sphi 0, %s166
    $region4: #{wasserstein_projection_forward.1} parent=1 // loop_header_branch
      %19 = sbr.rel (%p17) target = $region8
    $region5: #{wasserstein_projection_forward.1} parent=1 // loop_body
      %s21 = ssub.s32 %s16, 1
      %s22 = ssub.s32 %s16, 2
      %s23 = sadd.s32 %s16, 1
      %s24 = ssub.s32 %s16, %s23
      %p25 = scmp.eq.s32.totalorder %s24, 0
      %s27 = sadd.s32 %s26, 1
      %s28 = scalar_select %p25, %s26, %s27
      %p31 = pneg %p25
      %p32 = scmp.eq.s32.totalorder %s16, 1
      %p33 = por %p31, %p32
      %p34 = scmp.ne.s32.totalorder %s26, %s29
      %p35 = scmp.eq.s32.totalorder %s16, 0
      %p36 = por %p34, %p35
      %p37 = scmp.ne.s32.totalorder %s26, %s29
      %p38 = scmp.eq.s32.totalorder %s21, 1
      %p39 = por %p37, %p38
      %p40 = scmp.ne.s32.totalorder %s29, %s30
      %p41 = scmp.eq.s32.totalorder %s21, 0
      %p42 = por %p40, %p41
      %p43 = scmp.ne.s32.totalorder %s29, %s30
      %p44 = scmp.eq.s32.totalorder %s22, 1
      %p45 = por %p43, %p44
      %p47 = scmp.ne.s32.totalorder %s30, %s46
      %p48 = scmp.eq.s32.totalorder %s22, 0
      %p49 = por %p47, %p48
      %s50 = ssub.s32 %s16, %s23
      %p51 = scmp.eq.s32.totalorder %s50, 0
      %s53 = sadd.s32 %s52, 1
      %s54 = scalar_select %p51, %s52, %s53
      %p57 = pneg %p51
      %p58 = scmp.eq.s32.totalorder %s16, 1
      %p59 = por %p57, %p58
      %p60 = scmp.ne.s32.totalorder %s52, %s55
      %p61 = scmp.eq.s32.totalorder %s16, 0
      %p62 = por %p60, %p61
      %p63 = scmp.ne.s32.totalorder %s52, %s55
      %p64 = scmp.eq.s32.totalorder %s21, 1
      %p65 = por %p63, %p64
      %p66 = scmp.ne.s32.totalorder %s55, %s56
      %p67 = scmp.eq.s32.totalorder %s21, 0
      %p68 = por %p66, %p67
      %p69 = scmp.ne.s32.totalorder %s55, %s56
      %p70 = scmp.eq.s32.totalorder %s22, 1
      %p71 = por %p69, %p70
      %p73 = scmp.ne.s32.totalorder %s56, %s72
      %p74 = scmp.eq.s32.totalorder %s22, 0
      %p75 = por %p73, %p74
      %s77 = sadd.s32 %s76, 1
      %p80 = scmp.eq.s32.totalorder %s16, 1
      %p81 = scmp.ne.s32.totalorder %s76, %s78
      %p82 = scmp.eq.s32.totalorder %s16, 0
      %p83 = por %p81, %p82
      %p84 = scmp.ne.s32.totalorder %s76, %s78
      %p85 = scmp.eq.s32.totalorder %s21, 1
      %p86 = por %p84, %p85
      %p87 = scmp.ne.s32.totalorder %s78, %s79
      %p88 = scmp.eq.s32.totalorder %s21, 0
      %p89 = por %p87, %p88
      %p90 = scmp.ne.s32.totalorder %s78, %s79
      %p91 = scmp.eq.s32.totalorder %s22, 1
      %p92 = por %p90, %p91
      %p94 = scmp.ne.s32.totalorder %s79, %s93
      %p95 = scmp.eq.s32.totalorder %s22, 0
      %p96 = por %p94, %p95
      %s98 = sadd.s32 %s97, 1
      %p101 = scmp.eq.s32.totalorder %s16, 1
      %p102 = scmp.ne.s32.totalorder %s97, %s99
      %p103 = scmp.eq.s32.totalorder %s16, 0
      %p104 = por %p102, %p103
      %p105 = scmp.ne.s32.totalorder %s97, %s99
      %p106 = scmp.eq.s32.totalorder %s21, 1
      %p107 = por %p105, %p106
      %p108 = scmp.ne.s32.totalorder %s99, %s100
      %p109 = scmp.eq.s32.totalorder %s21, 0
      %p110 = por %p108, %p109
      %p111 = scmp.ne.s32.totalorder %s99, %s100
      %p112 = scmp.eq.s32.totalorder %s22, 1
      %p113 = por %p111, %p112
      %p115 = scmp.ne.s32.totalorder %s100, %s114
      %p116 = scmp.eq.s32.totalorder %s22, 0
      %p117 = por %p115, %p116
      %s119 = sadd.s32 %s118, 1
      %p122 = scmp.eq.s32.totalorder %s16, 1
      %p123 = scmp.ne.s32.totalorder %s118, %s120
      %p124 = scmp.eq.s32.totalorder %s16, 0
      %p125 = por %p123, %p124
      %p126 = scmp.ne.s32.totalorder %s118, %s120
      %p127 = scmp.eq.s32.totalorder %s21, 1
      %p128 = por %p126, %p127
      %p129 = scmp.ne.s32.totalorder %s120, %s121
      %p130 = scmp.eq.s32.totalorder %s21, 0
      %p131 = por %p129, %p130
      %p132 = scmp.ne.s32.totalorder %s120, %s121
      %p133 = scmp.eq.s32.totalorder %s22, 1
      %p134 = por %p132, %p133
      %p136 = scmp.ne.s32.totalorder %s121, %s135
      %p137 = scmp.eq.s32.totalorder %s22, 0
      %p138 = por %p136, %p137
      %s140 = sadd.s32 %s139, 1
      %p143 = scmp.eq.s32.totalorder %s16, 1
      %p144 = scmp.ne.s32.totalorder %s139, %s141
      %p145 = scmp.eq.s32.totalorder %s16, 0
      %p146 = por %p144, %p145
      %p147 = scmp.ne.s32.totalorder %s139, %s141
      %p148 = scmp.eq.s32.totalorder %s21, 1
      %p149 = por %p147, %p148
      %p150 = scmp.ne.s32.totalorder %s141, %s142
      %p151 = scmp.eq.s32.totalorder %s21, 0
      %p152 = por %p150, %p151
      %p153 = scmp.ne.s32.totalorder %s141, %s142
      %p154 = scmp.eq.s32.totalorder %s22, 1
      %p155 = por %p153, %p154
      %p157 = scmp.ne.s32.totalorder %s142, %s156
      %p158 = scmp.eq.s32.totalorder %s22, 0
      %p159 = por %p157, %p158
      %s160 = ssub.s32 %s16, %s23
      %p161 = scmp.eq.s32.totalorder %s160, 0
      %s163 = sadd.s32 %s162, 1
      %s164 = scalar_select %p161, %s162, %s163
      %p167 = pneg %p161
      %p168 = scmp.eq.s32.totalorder %s16, 1
      %p169 = por %p167, %p168
      %p170 = scmp.ne.s32.totalorder %s162, %s165
      %p171 = scmp.eq.s32.totalorder %s16, 0
      %p172 = por %p170, %p171
      %p173 = scmp.ne.s32.totalorder %s162, %s165
      %p174 = scmp.eq.s32.totalorder %s21, 1
      %p175 = por %p173, %p174
      %p176 = scmp.ne.s32.totalorder %s165, %s166
      %p177 = scmp.eq.s32.totalorder %s21, 0
      %p178 = por %p176, %p177
      %p179 = scmp.ne.s32.totalorder %s165, %s166
      %p180 = scmp.eq.s32.totalorder %s22, 1
      %p181 = por %p179, %p180
      %p183 = scmp.ne.s32.totalorder %s166, %s182
      %p184 = scmp.eq.s32.totalorder %s22, 0
      %p185 = por %p183, %p184
      %p186 = scmp.le.s32.totalorder 1, %s16
      %p187 = scmp.lt.s32.totalorder %s16, 3
      %p188 = pnand %p186, %p187
      %p189 = pneg %p188
      // Predicated region
      $region9: #{wasserstein_projection_forward.1} parent=5 // pred_check
        _
      $region10: #{wasserstein_projection_forward.1} parent=5 // pred_check_branch
        %191 = sbr.rel (%p188) target = $region12
      $region11: #{wasserstein_projection_forward.1} parent=5 // pred_region
        %s192 = ssub.s32 %s16, 1
        // Predicated region
        $region13: #{wasserstein_projection_forward.1} parent=11 // pred_check
          %p193 = pneg %p89
        $region14: #{wasserstein_projection_forward.1} parent=11 // pred_check_branch
          %195 = sbr.rel (%p193) target = $region16
        $region15: #{wasserstein_projection_forward.1} parent=11 // pred_region
          _
        $region16: #{wasserstein_projection_forward.1} parent=11 // pred_fallthru
          _
        // Predicated region
        $region17: #{wasserstein_projection_forward.1} parent=11 // pred_check
          %p196 = pneg %p110
        $region18: #{wasserstein_projection_forward.1} parent=11 // pred_check_branch
          %198 = sbr.rel (%p196) target = $region20
        $region19: #{wasserstein_projection_forward.1} parent=11 // pred_region
          %s200 = ssub.s32 64, 64
          %201 = vsyncadd [#allocation3], %s200
          %s203 = sshll.u32 [#allocation2], 4
          %s204 = int_to_ptr.vmem [resolvable:$true] %s203
          %206 = dma.hbm_to_vmem [thread:$0]  %s3, 64, %s204, [#allocation3]
        $region20: #{wasserstein_projection_forward.1} parent=11 // pred_fallthru
          _
        // Predicated region
        $region21: #{wasserstein_projection_forward.1} parent=11 // pred_check
          %p207 = pneg %p131
        $region22: #{wasserstein_projection_forward.1} parent=11 // pred_check_branch
          %209 = sbr.rel (%p207) target = $region24
        $region23: #{wasserstein_projection_forward.1} parent=11 // pred_region
          _
        $region24: #{wasserstein_projection_forward.1} parent=11 // pred_fallthru
          _
        // Predicated region
        $region25: #{wasserstein_projection_forward.1} parent=11 // pred_check
          %p210 = pneg %p152
        $region26: #{wasserstein_projection_forward.1} parent=11 // pred_check_branch
          %212 = sbr.rel (%p210) target = $region28
        $region27: #{wasserstein_projection_forward.1} parent=11 // pred_region
          _
        $region28: #{wasserstein_projection_forward.1} parent=11 // pred_fallthru
          _
      $region12: #{wasserstein_projection_forward.1} parent=5 // pred_fallthru
        _
      %p213 = scmp.lt.s32.totalorder %s16, 2
      // Predicated region
      $region29: #{wasserstein_projection_forward.1} parent=5 // pred_check
        %p214 = pneg %p213
      $region30: #{wasserstein_projection_forward.1} parent=5 // pred_check_branch
        %216 = sbr.rel (%p214) target = $region32
      $region31: #{wasserstein_projection_forward.1} parent=5 // pred_region
        // Predicated region
        $region33: #{wasserstein_projection_forward.1} parent=31 // pred_check
          %p217 = pneg %p36
        $region34: #{wasserstein_projection_forward.1} parent=31 // pred_check_branch
          %219 = sbr.rel (%p217) target = $region36
        $region35: #{wasserstein_projection_forward.1} parent=31 // pred_region
          %s220 = smul.u32 2, %s16
          %s221 = ssub.s32 3, %s220
          %p222 = scmp.lt.s32.totalorder %s221, 2
          %s223 = scalar_select %p222, %s221, 2
          %s224 = smul.u32 128, %s223
          %p225 = scmp.lt.s32.totalorder %s220, 2
          %s226 = scalar_select %p225, %s220, 2
          %s227 = smul.addr %s226, 8
          %s228 = scalar_lea.vmem %s0, %s227
          %s229 = smul.u32 2, %s16
          %s230 = ssub.s32 3, %s229
          %p231 = scmp.lt.s32.totalorder %s230, 2
          %s232 = scalar_select %p231, %s230, 2
          %s233 = smul.u32 128, %s232
        $region36: #{wasserstein_projection_forward.1} parent=31 // pred_fallthru
          _
        // Predicated region
        $region37: #{wasserstein_projection_forward.1} parent=31 // pred_check
          %p234 = pneg %p62
        $region38: #{wasserstein_projection_forward.1} parent=31 // pred_check_branch
          %236 = sbr.rel (%p234) target = $region40
        $region39: #{wasserstein_projection_forward.1} parent=31 // pred_region
          %s237 = smul.u32 2, %s16
          %s238 = ssub.s32 3, %s237
          %p239 = scmp.lt.s32.totalorder %s238, 2
          %s240 = scalar_select %p239, %s238, 2
          %s241 = smul.u32 128, %s240
          %p242 = scmp.lt.s32.totalorder %s237, 2
          %s243 = scalar_select %p242, %s237, 2
          %s244 = smul.addr %s243, 8
          %s245 = scalar_lea.vmem %s1, %s244
          %s246 = smul.u32 2, %s16
          %s247 = ssub.s32 3, %s246
          %p248 = scmp.lt.s32.totalorder %s247, 2
          %s249 = scalar_select %p248, %s247, 2
          %s250 = smul.u32 128, %s249
        $region40: #{wasserstein_projection_forward.1} parent=31 // pred_fallthru
          _
      $region32: #{wasserstein_projection_forward.1} parent=5 // pred_fallthru
        _
      %p251 = scmp.le.s32.totalorder 1, %s16
      %p252 = scmp.lt.s32.totalorder %s16, 3
      %p253 = pnand %p251, %p252
      %p254 = pneg %p253
      // Predicated region
      $region41: #{wasserstein_projection_forward.1} parent=5 // pred_check
        _
      $region42: #{wasserstein_projection_forward.1} parent=5 // pred_check_branch
        %256 = sbr.rel (%p253) target = $region44
      $region43: #{wasserstein_projection_forward.1} parent=5 // pred_region
        %s257 = ssub.s32 %s16, 1
        // Predicated region
        $region45: #{wasserstein_projection_forward.1} parent=43 // pred_check
          %p258 = pneg %p110
        $region46: #{wasserstein_projection_forward.1} parent=43 // pred_check_branch
          %260 = sbr.rel (%p258) target = $region48
        $region47: #{wasserstein_projection_forward.1} parent=43 // pred_region
          %261 = dma.done [#allocation3], 64
        $region48: #{wasserstein_projection_forward.1} parent=43 // pred_fallthru
          _
        %s262 = smul.u32 2, %s21
        %s263 = ssub.s32 3, %s262
        %p264 = scmp.lt.s32.totalorder %s263, 2
        %s265 = scalar_select %p264, %s263, 2
        %s266 = smul.u32 128, %s265
        %p267 = scmp.lt.s32.totalorder %s262, 2
        %s268 = scalar_select %p267, %s262, 2
        %s269 = smul.addr %s268, 8
        %s270 = scalar_lea.vmem %s0, %s269
        %p271 = pneg %p42
        %p272 = pneg %p39
        %s273 = smul.u32 2, %s21
        %s274 = ssub.s32 3, %s273
        %p275 = scmp.lt.s32.totalorder %s274, 2
        %s276 = scalar_select %p275, %s274, 2
        %s277 = smul.u32 128, %s276
        %p278 = scmp.lt.s32.totalorder %s273, 2
        %s279 = scalar_select %p278, %s273, 2
        %s280 = smul.addr %s279, 8
        %s281 = scalar_lea.vmem %s1, %s280
        %p282 = pneg %p68
        %p283 = pneg %p65
        %p284 = pneg %p89
        %p285 = pneg %p86
        %p286 = pneg %p110
        %p287 = pneg %p107
        %p288 = pneg %p131
        %p289 = pneg %p128
        %p290 = pneg %p152
        %p291 = pneg %p149
        %p292 = pneg %p178
        %p293 = pneg %p175
        %s294 = sand.u32 %s165, 1
        %s295 = scalar_lea.sflag [#allocation4], %s294
        %s296 = sand.u32 %s165, 1
        %s297 = smul.addr %s296, 16
        %s298 = scalar_lea.vmem [#allocation5], %s297
        %s299 = smul.u32 2, %s21
        %s300 = ssub.s32 3, %s299
        %p301 = scmp.lt.s32.totalorder %s300, 2
        %s302 = scalar_select %p301, %s300, 2
        %s303 = smul.u32 128, %s302
        %p304 = scmp.lt.s32.totalorder %s299, 2
        %s305 = scalar_select %p304, %s299, 2
        %s306 = smul.addr %s305, 8
        %s307 = scalar_lea.vmem %s0, %s306
        %s308 = smul.u32 2, %s21
        %s309 = ssub.s32 3, %s308
        %p310 = scmp.lt.s32.totalorder %s309, 2
        %s311 = scalar_select %p310, %s309, 2
        %s312 = smul.u32 128, %s311
        %s313 = smul.u32 2, %s21
        %s314 = ssub.s32 3, %s313
        %p315 = scmp.lt.s32.totalorder %s314, 2
        %s316 = scalar_select %p315, %s314, 2
        %s317 = smul.u32 128, %s316
        %p318 = scmp.lt.s32.totalorder %s313, 2
        %s319 = scalar_select %p318, %s313, 2
        %s320 = smul.addr %s319, 8
        %s321 = scalar_lea.vmem %s1, %s320
        %s322 = smul.u32 2, %s21
        %s323 = ssub.s32 3, %s322
        %p324 = scmp.lt.s32.totalorder %s323, 2
        %s325 = scalar_select %p324, %s323, 2
        %s326 = smul.u32 128, %s325
        %s327 = smul.u32 2, %s21
        %s328 = ssub.s32 3, %s327
        %p329 = scmp.lt.s32.totalorder %s328, 2
        %s330 = scalar_select %p329, %s328, 2
        %s331 = smul.u32 128, %s330
        %v333 = vld [vmem:[%s307] sm:$0xff]
        %v334 = vld [vmem:[%s307 + $0x8] sm:$0xff]
        %v335 = vpack.c.bf16 %v334, %v333
        %v336 = vld [vmem:[%s321] sm:$0xff]
        %v337 = vld [vmem:[%s321 + $0x8] sm:$0xff]
        %v338 = vld [vmem:[#allocation2] sm:$0xf]
        %v339 = vld [vmem:[%s2] sm:$0xff]
        %v340 = vld [vmem:[%s2 + $0x8] sm:$0xff]
        %v341 = vld [vmem:[%s2 + $0x10] sm:$0xff]
        %v342 = vld [vmem:[%s2 + $0x18] sm:$0xff]
        %v343 = vld [vmem:[%s2 + $0x20] sm:$0xff]
        %v344 = vld [vmem:[%s2 + $0x28] sm:$0xff]
        %v345 = vld [vmem:[%s2 + $0x30] sm:$0xff]
        %v346 = vld [vmem:[%s2 + $0x38] sm:$0xff]
        %v347 = vld [vmem:[%s2 + $0x40] sm:$0xff]
        %v348 = vld [vmem:[%s2 + $0x48] sm:$0xff]
        %v349 = vld [vmem:[%s2 + $0x50] sm:$0xff]
        %v350 = vld [vmem:[%s2 + $0x58] sm:$0xff]
        %v351 = vld [vmem:[%s2 + $0x60] sm:$0xff]
        %v352 = vld [vmem:[%s2 + $0x68] sm:$0xff]
        %v353 = vld [vmem:[%s2 + $0x70] sm:$0xff]
        %v354 = vld [vmem:[%s2 + $0x78] sm:$0xff]
        %v355 = vld [vmem:[%s2 + $0x80] sm:$0xff]
        %v356 = vld [vmem:[%s2 + $0x88] sm:$0xff]
        %v357 = vld [vmem:[%s2 + $0x90] sm:$0xff]
        %v358 = vld [vmem:[%s2 + $0x98] sm:$0xff]
        %v359 = vld [vmem:[%s2 + $0xa0] sm:$0xff]
        %v360 = vld [vmem:[%s2 + $0xa8] sm:$0xff]
        %v361 = vld [vmem:[%s2 + $0xb0] sm:$0xff]
        %v362 = vld [vmem:[%s2 + $0xb8] sm:$0xff]
        %v363 = vld [vmem:[%s2 + $0xc0] sm:$0xff]
        %v364 = vld [vmem:[%s2 + $0xc8] sm:$0xff]
        %v365 = vld [vmem:[%s2 + $0xd0] sm:$0xff]
        %v366 = vld [vmem:[%s2 + $0xd8] sm:$0xff]
        %v367 = vld [vmem:[%s2 + $0xe0] sm:$0xff]
        %v368 = vld [vmem:[%s2 + $0xe8] sm:$0xff]
        %v369 = vld [vmem:[%s2 + $0xf0] sm:$0xff]
        %v370 = vld [vmem:[%s2 + $0xf8] sm:$0xff]
        %v403 = vunpack.c.l.b16 %v339
        %v404 = vunpack.c.h.b16 %v339
        %v405 = vunpack.c.l.b16 %v340
        %v406 = vunpack.c.h.b16 %v340
        %v407 = vunpack.c.l.b16 %v341
        %v408 = vunpack.c.h.b16 %v341
        %v409 = vunpack.c.l.b16 %v342
        %v410 = vunpack.c.h.b16 %v342
        %v411 = vunpack.c.l.b16 %v343
        %v412 = vunpack.c.h.b16 %v343
        %v413 = vunpack.c.l.b16 %v344
        %v414 = vunpack.c.h.b16 %v344
        %v415 = vunpack.c.l.b16 %v345
        %v416 = vunpack.c.h.b16 %v345
        %v417 = vunpack.c.l.b16 %v346
        %v418 = vunpack.c.h.b16 %v346
        %v419 = vunpack.c.l.b16 %v347
        %v420 = vunpack.c.h.b16 %v347
        %v421 = vunpack.c.l.b16 %v348
        %v422 = vunpack.c.h.b16 %v348
        %v423 = vunpack.c.l.b16 %v349
        %v424 = vunpack.c.h.b16 %v349
        %v425 = vunpack.c.l.b16 %v350
        %v426 = vunpack.c.h.b16 %v350
        %v427 = vunpack.c.l.b16 %v351
        %v428 = vunpack.c.h.b16 %v351
        %v429 = vunpack.c.l.b16 %v352
        %v430 = vunpack.c.h.b16 %v352
        %v431 = vunpack.c.l.b16 %v353
        %v432 = vunpack.c.h.b16 %v353
        %v433 = vunpack.c.l.b16 %v354
        %v434 = vunpack.c.h.b16 %v354
        %v435 = vunpack.c.l.b16 %v355
        %v436 = vunpack.c.h.b16 %v355
        %v437 = vunpack.c.l.b16 %v356
        %v438 = vunpack.c.h.b16 %v356
        %v439 = vunpack.c.l.b16 %v357
        %v440 = vunpack.c.h.b16 %v357
        %v441 = vunpack.c.l.b16 %v358
        %v442 = vunpack.c.h.b16 %v358
        %v443 = vunpack.c.l.b16 %v359
        %v444 = vunpack.c.h.b16 %v359
        %v445 = vunpack.c.l.b16 %v360
        %v446 = vunpack.c.h.b16 %v360
        %v447 = vunpack.c.l.b16 %v361
        %v448 = vunpack.c.h.b16 %v361
        %v449 = vunpack.c.l.b16 %v362
        %v450 = vunpack.c.h.b16 %v362
        %v451 = vunpack.c.l.b16 %v363
        %v452 = vunpack.c.h.b16 %v363
        %v453 = vunpack.c.l.b16 %v364
        %v454 = vunpack.c.h.b16 %v364
        %v455 = vunpack.c.l.b16 %v365
        %v456 = vunpack.c.h.b16 %v365
        %v457 = vunpack.c.l.b16 %v366
        %v458 = vunpack.c.h.b16 %v366
        %v459 = vunpack.c.l.b16 %v367
        %v460 = vunpack.c.h.b16 %v367
        %v461 = vunpack.c.l.b16 %v368
        %v462 = vunpack.c.h.b16 %v368
        %v463 = vunpack.c.l.b16 %v369
        %v464 = vunpack.c.h.b16 %v369
        %v465 = vunpack.c.l.b16 %v370
        %v466 = vunpack.c.h.b16 %v370
        %v467 = vpack.c.b16 %v407, %v403
        %v468 = vpack.c.b16 %v408, %v404
        %v469 = vpack.c.b16 %v409, %v405
        %v470 = vpack.c.b16 %v410, %v406
        %v471 = vpack.c.b16 %v415, %v411
        %v472 = vpack.c.b16 %v416, %v412
        %v473 = vpack.c.b16 %v417, %v413
        %v474 = vpack.c.b16 %v418, %v414
        %v475 = vpack.c.b16 %v423, %v419
        %v476 = vpack.c.b16 %v424, %v420
        %v477 = vpack.c.b16 %v425, %v421
        %v478 = vpack.c.b16 %v426, %v422
        %v479 = vpack.c.b16 %v431, %v427
        %v480 = vpack.c.b16 %v432, %v428
        %v481 = vpack.c.b16 %v433, %v429
        %v482 = vpack.c.b16 %v434, %v430
        %v483 = vpack.c.b16 %v439, %v435
        %v484 = vpack.c.b16 %v440, %v436
        %v485 = vpack.c.b16 %v441, %v437
        %v486 = vpack.c.b16 %v442, %v438
        %v487 = vpack.c.b16 %v447, %v443
        %v488 = vpack.c.b16 %v448, %v444
        %v489 = vpack.c.b16 %v449, %v445
        %v490 = vpack.c.b16 %v450, %v446
        %v491 = vpack.c.b16 %v455, %v451
        %v492 = vpack.c.b16 %v456, %v452
        %v493 = vpack.c.b16 %v457, %v453
        %v494 = vpack.c.b16 %v458, %v454
        %v495 = vpack.c.b16 %v463, %v459
        %v496 = vpack.c.b16 %v464, %v460
        %v497 = vpack.c.b16 %v465, %v461
        %v498 = vpack.c.b16 %v466, %v462
        %531 = vmatprep.subr.bf16.mxu0 %v468
        %532 = vmatpush1.bf16.msra.mxu0 %v467
        %533 = vmatprep.subr.bf16.mxu0 %v472
        %534 = vmatpush1.bf16.msra.mxu0 %v471
        %535 = vmatprep.subr.bf16.mxu0 %v476
        %536 = vmatpush1.bf16.msra.mxu0 %v475
        %537 = vmatprep.subr.bf16.mxu0 %v480
        %538 = vmatpush1.bf16.msra.mxu0 %v479
        %539 = vmatprep.subr.bf16.mxu0 %v484
        %540 = vmatpush1.bf16.msra.mxu0 %v483
        %541 = vmatprep.subr.bf16.mxu0 %v488
        %542 = vmatpush1.bf16.msra.mxu0 %v487
        %543 = vmatprep.subr.bf16.mxu0 %v492
        %544 = vmatpush1.bf16.msra.mxu0 %v491
        %545 = vmatprep.subr.bf16.mxu0 %v496
        %546 = vmatpush1.bf16.msra.mxu0 %v495
        %547 = vmatprep.subr.bf16.mxu0 0
        %548 = vmatpush1.bf16.msra.mxu0 0
        %549 = vmatprep.subr.bf16.mxu0 0
        %550 = vmatpush1.bf16.msra.mxu0 0
        %551 = vmatprep.subr.bf16.mxu0 0
        %552 = vmatpush1.bf16.msra.mxu0 0
        %553 = vmatprep.subr.bf16.mxu0 0
        %554 = vmatpush1.bf16.msra.mxu0 0
        %555 = vmatprep.subr.bf16.mxu0 0
        %556 = vmatpush1.bf16.msra.mxu0 0
        %557 = vmatprep.subr.bf16.mxu0 0
        %558 = vmatpush1.bf16.msra.mxu0 0
        %559 = vmatprep.subr.bf16.mxu0 0
        %560 = vmatpush1.bf16.msra.mxu0 0
        %561 = vmatprep.subr.bf16.mxu0 0
        %562 = vmatpush1.bf16.msra.mxu0 0
        %563 = vmatprep.mubr.bf16.mxu0 0
        %564 = vmatmul.mubr.bf16.gmra.mrb[0].mxu0 %v335
        %v565 = vpop.f32.mrb[0].mxu0
        %v566 = vadd.f32 0.0, %v565
        %v567 = vpop.f32.mrb[0].mxu0
        %v568 = vadd.f32 0.0, %v567
        %v569 = vpop.f32.mrb[0].mxu0
        %v570 = vadd.f32 0.0, %v569
        %v571 = vpop.f32.mrb[0].mxu0
        %v572 = vadd.f32 0.0, %v571
        %573 = vdwg.mxu0
        %574 = vmatprep.subr.bf16.mxu0 %v470
        %575 = vmatpush1.bf16.msra.mxu0 %v469
        %576 = vmatprep.subr.bf16.mxu0 %v474
        %577 = vmatpush1.bf16.msra.mxu0 %v473
        %578 = vmatprep.subr.bf16.mxu0 %v478
        %579 = vmatpush1.bf16.msra.mxu0 %v477
        %580 = vmatprep.subr.bf16.mxu0 %v482
        %581 = vmatpush1.bf16.msra.mxu0 %v481
        %582 = vmatprep.subr.bf16.mxu0 %v486
        %583 = vmatpush1.bf16.msra.mxu0 %v485
        %584 = vmatprep.subr.bf16.mxu0 %v490
        %585 = vmatpush1.bf16.msra.mxu0 %v489
        %586 = vmatprep.subr.bf16.mxu0 %v494
        %587 = vmatpush1.bf16.msra.mxu0 %v493
        %588 = vmatprep.subr.bf16.mxu0 %v498
        %589 = vmatpush1.bf16.msra.mxu0 %v497
        %590 = vmatprep.subr.bf16.mxu0 0
        %591 = vmatpush1.bf16.msra.mxu0 0
        %592 = vmatprep.subr.bf16.mxu0 0
        %593 = vmatpush1.bf16.msra.mxu0 0
        %594 = vmatprep.subr.bf16.mxu0 0
        %595 = vmatpush1.bf16.msra.mxu0 0
        %596 = vmatprep.subr.bf16.mxu0 0
        %597 = vmatpush1.bf16.msra.mxu0 0
        %598 = vmatprep.subr.bf16.mxu0 0
        %599 = vmatpush1.bf16.msra.mxu0 0
        %600 = vmatprep.subr.bf16.mxu0 0
        %601 = vmatpush1.bf16.msra.mxu0 0
        %602 = vmatprep.subr.bf16.mxu0 0
        %603 = vmatpush1.bf16.msra.mxu0 0
        %604 = vmatprep.subr.bf16.mxu0 0
        %605 = vmatpush1.bf16.msra.mxu0 0
        %606 = vmatprep.mubr.bf16.mxu0 0
        %607 = vmatmul.mubr.bf16.gmra.mrb[0].mxu0 %v335
        %v608 = vpop.f32.mrb[0].mxu0
        %v609 = vadd.f32 0.0, %v608
        %v610 = vpop.f32.mrb[0].mxu0
        %v611 = vadd.f32 0.0, %v610
        %v612 = vpop.f32.mrb[0].mxu0
        %v613 = vadd.f32 0.0, %v612
        %v614 = vpop.f32.mrb[0].mxu0
        %v615 = vadd.f32 0.0, %v614
        %616 = vdwg.mxu0
        %618 = vset.pattern.permute.xlu0 0
        %619 = vperm.xlu0 %618, %v336
        %v620 = vpop.permute.xlu0 %619
        %623 = vset.pattern.permute.xlu0 0
        %624 = vperm.xlu0 %623, %v337
        %v625 = vpop.permute.xlu0 %624
        %v627 = vmul.f32 %v620, %v566
        %v628 = vmul.f32 %v625, %v570
        %vm629 = vcmask 31744
        %v630 = vsel %vm629, %v336, 0
        %v632 = vsel %vm629, %v337, 0
        %vm634 = vcmask 1043456
        %v636 = vsel %vm634, %v338, 0
        %638 = vmatprep.subr.mxu0 0.0
        %639 = vmatpush1.msra.mxu0 %v636
        %640 = vmatprep.subr.mxu0 0.0
        %641 = vmatpush1.msra.mxu0 0.0
        %642 = vmatprep.subr.mxu0 0.0
        %643 = vmatpush1.msra.mxu0 0.0
        %644 = vmatprep.subr.mxu0 0.0
        %645 = vmatpush1.msra.mxu0 0.0
        %646 = vmatprep.subr.mxu0 0.0
        %647 = vmatpush1.msra.mxu0 0.0
        %648 = vmatprep.subr.mxu0 0.0
        %649 = vmatpush1.msra.mxu0 0.0
        %650 = vmatprep.subr.mxu0 0.0
        %651 = vmatpush1.msra.mxu0 0.0
        %652 = vmatprep.subr.mxu0 0.0
        %653 = vmatpush1.msra.mxu0 0.0
        %654 = vmatprep.subr.mxu0 0.0
        %655 = vmatpush1.msra.mxu0 0.0
        %656 = vmatprep.subr.mxu0 0.0
        %657 = vmatpush1.msra.mxu0 0.0
        %658 = vmatprep.subr.mxu0 0.0
        %659 = vmatpush1.msra.mxu0 0.0
        %660 = vmatprep.subr.mxu0 0.0
        %661 = vmatpush1.msra.mxu0 0.0
        %662 = vmatprep.subr.mxu0 0.0
        %663 = vmatpush1.msra.mxu0 0.0
        %664 = vmatprep.subr.mxu0 0.0
        %665 = vmatpush1.msra.mxu0 0.0
        %666 = vmatprep.subr.mxu0 0.0
        %667 = vmatpush1.msra.mxu0 0.0
        %668 = vmatprep.subr.mxu0 0.0
        %669 = vmatpush1.msra.mxu0 0.0
        %670 = vmatprep.subr.mxu0 0.0
        %671 = vmatpush1.msra.mxu0 0.0
        %672 = vmatprep.subr.mxu0 0.0
        %673 = vmatpush1.msra.mxu0 0.0
        %674 = vmatprep.subr.mxu0 0.0
        %675 = vmatpush1.msra.mxu0 0.0
        %676 = vmatprep.subr.mxu0 0.0
        %677 = vmatpush1.msra.mxu0 0.0
        %678 = vmatprep.subr.mxu0 0.0
        %679 = vmatpush1.msra.mxu0 0.0
        %680 = vmatprep.subr.mxu0 0.0
        %681 = vmatpush1.msra.mxu0 0.0
        %682 = vmatprep.subr.mxu0 0.0
        %683 = vmatpush1.msra.mxu0 0.0
        %684 = vmatprep.subr.mxu0 0.0
        %685 = vmatpush1.msra.mxu0 0.0
        %686 = vmatprep.subr.mxu0 0.0
        %687 = vmatpush1.msra.mxu0 0.0
        %688 = vmatprep.subr.mxu0 0.0
        %689 = vmatpush1.msra.mxu0 0.0
        %690 = vmatprep.subr.mxu0 0.0
        %691 = vmatpush1.msra.mxu0 0.0
        %692 = vmatprep.subr.mxu0 0.0
        %693 = vmatpush1.msra.mxu0 0.0
        %694 = vmatprep.subr.mxu0 0.0
        %695 = vmatpush1.msra.mxu0 0.0
        %696 = vmatprep.subr.mxu0 0.0
        %697 = vmatpush1.msra.mxu0 0.0
        %698 = vmatprep.subr.mxu0 0.0
        %699 = vmatpush1.msra.mxu0 0.0
        %700 = vmatprep.subr.mxu0 0.0
        %701 = vmatpush1.msra.mxu0 0.0
        %702 = vmatprep.mubr.f32.mxu0 0.0
        %703 = vmatmul.mubr.f32.gmra.mrb[0].mxu0 %v630
        %v704 = vpop.f32.mrb[0].mxu0
        %v705 = vadd.f32 %v627, %v704
        %v706 = vpop.f32.mrb[0].mxu0
        %707 = vmatprep.mubr.f32.mxu0 0.0
        %708 = vmatmul.mubr.f32.gmra.mrb[0].mxu0 %v632
        %v709 = vpop.f32.mrb[0].mxu0
        %v710 = vadd.f32 %v628, %v709
        %v711 = vpop.f32.mrb[0].mxu0
        %712 = vdwg.mxu0
        %713 = vset.pattern.permute.xlu0 1
        %714 = vperm.xlu0 %713, %v336
        %v715 = vpop.permute.xlu0 %714
        %717 = vset.pattern.permute.xlu0 1
        %718 = vperm.xlu0 %717, %v337
        %v719 = vpop.permute.xlu0 %718
        %v721 = vmul.f32 %v715, %v568
        %v722 = vmul.f32 %v719, %v572
        %v723 = vadd.f32 %v705, %v721
        %v724 = vadd.f32 %v710, %v722
        %725 = vset.pattern.permute.xlu0 2
        %726 = vperm.xlu0 %725, %v336
        %v727 = vpop.permute.xlu0 %726
        %729 = vset.pattern.permute.xlu0 2
        %730 = vperm.xlu0 %729, %v337
        %v731 = vpop.permute.xlu0 %730
        %v733 = vmul.f32 %v727, %v609
        %v734 = vmul.f32 %v731, %v613
        %v735 = vadd.f32 %v723, %v733
        %v736 = vadd.f32 %v724, %v734
        %737 = vset.pattern.permute.xlu0 3
        %738 = vperm.xlu0 %737, %v336
        %v739 = vpop.permute.xlu0 %738
        %741 = vset.pattern.permute.xlu0 3
        %742 = vperm.xlu0 %741, %v337
        %v743 = vpop.permute.xlu0 %742
        %v745 = vmul.f32 %v739, %v611
        %v746 = vmul.f32 %v743, %v615
        %v747 = vadd.f32 %v735, %v745
        %v748 = vadd.f32 %v736, %v746
        %749 = vadd.xlane.f32.xlu0 %v747
        %v750 = vpop.xlane.xlu0 %749
        %751 = vadd.xlane.f32.xlu0 %v748
        %v752 = vpop.xlane.xlu0 %751
        %v753 = vrcp.pop 128.0
        %v754 = vmul.f32 %v750, %v753
        %v755 = vmul.f32 %v752, %v753
        %v756 = vsub.f32 %v747, %v754
        %v757 = vsub.f32 %v748, %v755
        %v758 = vmul.f32 %v756, %v756
        %v759 = vmul.f32 %v757, %v757
        %760 = vadd.xlane.f32.xlu0 %v758
        %v761 = vpop.xlane.xlu0 %760
        %762 = vadd.xlane.f32.xlu0 %v759
        %v763 = vpop.xlane.xlu0 %762
        %v764 = vmul.f32 %v761, %v753
        %v765 = vmul.f32 %v763, %v753
        %v766 = vadd.f32 %v764, 1e-05
        %v767 = vadd.f32 %v765, 1e-05
        %v768 = vrsqrt.pop %v766
        %v769 = vrsqrt.pop %v767
        %v770 = vmul.f32 %v756, %v768
        %v771 = vmul.f32 %v757, %v769
        %v772 = vld [vmem:[%s4] sm:$0x1]
        %v774 = vlaneseq
        %v775 = vshrl.u32 %v774, 7
        %v776 = vsub.s32 0, %v775
        %v777 = vrot.slane %v772, %v776
        %v779 = vmul.f32 %v770, %v777
        %v780 = vmul.f32 %v771, %v777
        %v781 = vld [vmem:[%s5] sm:$0x1]
        %v783 = vlaneseq
        %v784 = vshrl.u32 %v783, 7
        %v785 = vsub.s32 0, %v784
        %v786 = vrot.slane %v781, %v785
        %v788 = vadd.f32 %v779, %v786
        %v789 = vadd.f32 %v780, %v786
        %v790 = vxor.u32 %v788, 2147483648
        %v791 = vxor.u32 %v789, 2147483648
        %v792 = vmul.f32 %v790, 1.442695
        %v793 = vpow.pop %v792
        %v794 = vmul.f32 %v791, 1.442695
        %v795 = vpow.pop %v794
        %v796 = vadd.f32 %v793, 1.0
        %v797 = vadd.f32 %v795, 1.0
        %v798 = vrcp.pop %v796
        %v799 = vmul.f32 1.0, %v798
        %v800 = vrcp.pop %v797
        %v801 = vmul.f32 1.0, %v800
        %802 = vst [vmem:[%s298] sm:$0xff] %v799
        %803 = vst [vmem:[%s298 + $0x8] sm:$0xff] %v801
        %s804 = sand.u32 %s165, 1
        %s805 = scalar_lea.sflag [#allocation4], %s804
        %s806 = sand.u32 %s165, 1
        %s807 = smul.addr %s806, 16
        %s808 = scalar_lea.vmem [#allocation5], %s807
        // Predicated region
        $region49: #{wasserstein_projection_forward.1} parent=43 // pred_check
          %p809 = pneg %p175
        $region50: #{wasserstein_projection_forward.1} parent=43 // pred_check_branch
          %811 = sbr.rel (%p809) target = $region52
        $region51: #{wasserstein_projection_forward.1} parent=43 // pred_region
          %s812 = smul.u32 2, %s21
          %s813 = ssub.s32 3, %s812
          %p814 = scmp.lt.s32.totalorder %s813, 2
          %s815 = scalar_select %p814, %s813, 2
          %s816 = smul.u32 128, %s815
          %s818 = ssub.s32 256, %s816
          %819 = vsyncadd %s805, %s818
          %p820 = scmp.ne.s32.totalorder 0, %s816
          %s821 = smul.addr %s812, 128
          %s822 = scalar_lea.hbm %s6, %s821
          %s823 = smul.u32 8, %s815
          %s824 = sshll.u32 %s808, 4
          %s825 = int_to_ptr.vmem [resolvable:$true] %s824
          %s826 = sshll.u32 %s823, 4
          %830 = dma.vmem_to_hbm [thread:$0]  (%p820), %s825, %s826, %s822, %s805, 128, 128, 8
        $region52: #{wasserstein_projection_forward.1} parent=43 // pred_fallthru
          _
      $region44: #{wasserstein_projection_forward.1} parent=5 // pred_fallthru
        _
      %p831 = scmp.le.s32.totalorder 2, %s16
      // Predicated region
      $region53: #{wasserstein_projection_forward.1} parent=5 // pred_check
        %p832 = pneg %p831
      $region54: #{wasserstein_projection_forward.1} parent=5 // pred_check_branch
        %834 = sbr.rel (%p832) target = $region56
      $region55: #{wasserstein_projection_forward.1} parent=5 // pred_region
        %s835 = ssub.s32 %s16, 2
        // Predicated region
        $region57: #{wasserstein_projection_forward.1} parent=55 // pred_check
          %p836 = pneg %p181
        $region58: #{wasserstein_projection_forward.1} parent=55 // pred_check_branch
          %838 = sbr.rel (%p836) target = $region60
        $region59: #{wasserstein_projection_forward.1} parent=55 // pred_region
          %s839 = sand.u32 %s166, 1
          %s840 = scalar_lea.sflag [#allocation4], %s839
          %s841 = sand.u32 %s166, 1
          %s842 = smul.addr %s841, 16
          %s843 = scalar_lea.vmem [#allocation5], %s842
          %844 = dma.done %s840, 256
        $region60: #{wasserstein_projection_forward.1} parent=55 // pred_fallthru
          _
      $region56: #{wasserstein_projection_forward.1} parent=5 // pred_fallthru
        _
    $region6: #{wasserstein_projection_forward.1} parent=1 // loop_footer
      %s20 = sadd.s32 1, %s16
    $region7: #{wasserstein_projection_forward.1} parent=1 // loop_footer_branch
      %15 = sbr.rel target = $region3
    $region8: #{wasserstein_projection_forward.1} parent=1 // loop_exit
      _
    %845 = vsyncpa [#allocation3], 1
    %s846 = scalar_lea.sflag [#allocation3], 1
    %847 = vsyncpa %s846, 1
    %848 = vsyncpa [#allocation4], 1
    %s849 = scalar_lea.sflag [#allocation4], 1
    %850 = vsyncpa %s849, 1

</llo_original>
